<compile_context>
chip_gen: v6e
topology: v6e:2x2x1
jax: 0.10.0
libtpu: 0.0.40
codegen_flags: <defaults>
</compile_context>

<pallas_src>
import math
from functools import partial

import jax
import jax.numpy as jnp
from jax.experimental import pallas as pl
from jax.experimental.pallas import tpu as pltpu

HALF_LOG_2PI = 0.5 * math.log(2.0 * math.pi)


def _round_up(x, m):
    return ((x + m - 1) // m) * m


def _softplus(x):
    # numerically-stable softplus with only VPU/EUP ops
    return jnp.maximum(x, 0.0) + jnp.log1p(jnp.exp(-jnp.abs(x)))


def actor_kernel(xe_ref, blob_ref, out_ref, *, s_pad, width, action_dim, action_range):
    S, W, A = s_pad, width, action_dim

    # --- merged streaming input: [ state (zero-padded) | eps ] ---
    xe = xe_ref[...]
    x = xe[:, 0:S]
    eps = xe[:, S:S + A]

    # --- unpack fused parameter blob (sublane-aligned static slices; resident in VMEM) ---
    w1 = blob_ref[0:S, :]                    # [S, W]
    w2 = blob_ref[S:S + W, :]                # [W, W]
    wh = blob_ref[S + W:S + 2 * W, :]        # [W, W]  (mu|sigma head, zero-padded)
    r0 = S + 2 * W
    b1 = blob_ref[r0:r0 + 1, :]              # [1, W]
    b2 = blob_ref[r0 + 1:r0 + 2, :]          # [1, W]
    bh = blob_ref[r0 + 2:r0 + 3, :]          # [1, W]

    # --- MLP trunk ---
    h1 = jnp.maximum(jnp.dot(x, w1, preferred_element_type=jnp.float32) + b1, 0.0)
    h2 = jnp.maximum(jnp.dot(h1, w2, preferred_element_type=jnp.float32) + b2, 0.0)

    # --- fused mu|sigma head: one MXU pass instead of two ---
    head = jnp.dot(h2, wh, preferred_element_type=jnp.float32) + bh   # [bm, W]
    mu = head[:, 0:A]
    sigma = _softplus(head[:, A:2 * A])
    log_sigma = jnp.log(sigma)

    act_pre = mu + sigma * eps                           # Normal.rsample
    entropy = 0.5 + HALF_LOG_2PI + log_sigma             # Normal.entropy
    # Normal.log_prob(act_pre): (act_pre - mu)/sigma == eps, so no divide needed.
    logp = -0.5 * eps * eps - log_sigma - HALF_LOG_2PI

    # tanh squash + change-of-variables correction (keep the +1e-6 exactly as torch does;
    # the log(1-tanh^2) softplus identity would change these values slightly).
    act_tanh = jnp.tanh(act_pre)
    act = act_tanh * action_range
    logp = logp - jnp.log(action_range * (1.0 - act_tanh * act_tanh) + 1e-6)
    logp_sum = jnp.sum(logp, axis=1, keepdims=True)      # [bm, 1]

    # --- direct slice stores into the lane-dense output slab (no fill, no concat) ---
    # TODO(synk): lane-packing 8 batch rows per 128-lane row (and lane-densifying the
    # EUP tail) would cut output HBM traffic / transcendental vreg count further but
    # needs a sublane->lane reshuffle; kept f32 + simple stores for robustness.
    out_ref[:, 0:A] = act
    out_ref[:, A:2 * A] = entropy
    out_ref[:, 2 * A:2 * A + 1] = logp_sum


def pack_params(params, state_dim, hidden, action_dim):
    """Fuse mu|sigma head and pack all weights/biases into one sublane-aligned blob."""
    S_pad = _round_up(max(state_dim, 1), 8)
    W = _round_up(max(hidden, 2 * action_dim), 8)
    assert S_pad % 8 == 0 and W % 8 == 0

    def pad_to(x, rows, cols):
        return jnp.pad(x, ((0, rows - x.shape[0]), (0, cols - x.shape[1])))

    w_head = jnp.concatenate([params["wmu"], params["wsig"]], axis=1)   # [H, 2A]
    b_head = jnp.concatenate([params["bmu"], params["bsig"]], axis=1)   # [1, 2A]
    blob = jnp.concatenate([
        pad_to(params["w1"], S_pad, W),    # rows [0, S_pad)
        pad_to(params["w2"], W, W),        # rows [S_pad, S_pad+W)
        pad_to(w_head, W, W),              # rows [S_pad+W, S_pad+2W)
        pad_to(params["b1"], 1, W),        # row  S_pad+2W
        pad_to(params["b2"], 1, W),        # row  S_pad+2W+1
        pad_to(b_head, 1, W),              # row  S_pad+2W+2
    ], axis=0)
    rows = blob.shape[0]
    rows_pad = _round_up(rows, 8)
    if rows_pad != rows:
        blob = jnp.pad(blob, ((0, rows_pad - rows), (0, 0)))
    return blob, S_pad, W


def actor_forward(state, params, eps, action_range, *, block_b=2048):
    """state: [B, S] f32; eps: [B, A] f32 ~ N(0,1); params: dict of weights."""
    B, S = state.shape
    hidden = params["w1"].shape[1]
    A = params["wmu"].shape[1]
    blob, S_pad, W = pack_params(params, S, hidden, A)
    out_lanes = _round_up(2 * A + 1, 128)   # act(A) | entropy(A) | logp(1), lane-dense

    # Batch tiling: big tiles to amortize per-step overhead; balanced tiles; and at
    # least 2 grid steps when the batch allows so v7x megacore can use both cores.
    b8 = _round_up(B, 8)
    nb = max(1, pl.cdiv(b8, _round_up(block_b, 8)))
    if nb == 1 and b8 >= 16:
        nb = 2
    bm = _round_up(pl.cdiv(b8, nb), 8)
    B_pad = bm * nb

    # Merged streaming input: [ state zero-padded to S_pad | eps ]  -> one DMA per step.
    xe = jnp.concatenate([jnp.pad(state, ((0, 0), (0, S_pad - S))), eps], axis=1)
    if B_pad != B:
        xe = jnp.pad(xe, ((0, B_pad - B), (0, 0)))

    kernel = partial(actor_kernel, s_pad=S_pad, width=W, action_dim=A,
                     action_range=float(action_range))

    out = pl.pallas_call(
        kernel,
        out_shape=jax.ShapeDtypeStruct((B_pad, out_lanes), jnp.float32),
        grid_spec=pltpu.PrefetchScalarGridSpec(
            num_scalar_prefetch=0,
            grid=(nb,),
            in_specs=[
                pl.BlockSpec((bm, S_pad + A), lambda i: (i, 0)),      # state|eps stream
                pl.BlockSpec((blob.shape[0], W), lambda i: (0, 0)),   # params resident
            ],
            out_specs=pl.BlockSpec((bm, out_lanes), lambda i: (i, 0)),
        ),
        compiler_params=pltpu.CompilerParams(
            dimension_semantics=("parallel",),        # megacore sharding on v7x
            vmem_limit_bytes=32 * 1024 * 1024,        # covers big tiles on v5e too
        ),
    )(xe, blob)

    act = out[:B, 0:A]
    entropy = out[:B, A:2 * A]
    logp = out[:B, 2 * A:2 * A + 1]
    return act, logp, entropy


def init_params(key, state_dim, action_dim, hidden=16):
    """Deterministic PyTorch-Linear-style init; weights stored as [in, out]."""
    def linear(k, fan_in, fan_out):
        kw, kb = jax.random.split(k)
        bound = 1.0 / math.sqrt(fan_in)
        w = jax.random.uniform(kw, (fan_in, fan_out), jnp.float32, -bound, bound)
        b = jax.random.uniform(kb, (1, fan_out), jnp.float32, -bound, bound)
        return w, b

    k1, k2, k3, k4 = jax.random.split(key, 4)
    w1, b1 = linear(k1, state_dim, hidden)
    w2, b2 = linear(k2, hidden, hidden)
    wmu, bmu = linear(k3, hidden, action_dim)
    wsig, bsig = linear(k4, hidden, action_dim)
    return dict(w1=w1, b1=b1, w2=w2, b2=b2,
                wmu=wmu, bmu=bmu, wsig=wsig, bsig=bsig)


def actor_forward_ref(state, params, eps, action_range):
    """Pure-JAX reference for correctness check."""
    h1 = jnp.maximum(state @ params["w1"] + params["b1"], 0.0)
    h2 = jnp.maximum(h1 @ params["w2"] + params["b2"], 0.0)
    mu = h2 @ params["wmu"] + params["bmu"]
    sigma = jax.nn.softplus(h2 @ params["wsig"] + params["bsig"])
    act_pre = mu + sigma * eps
    entropy = 0.5 + HALF_LOG_2PI + jnp.log(sigma)
    logp = -0.5 * ((act_pre - mu) / sigma) ** 2 - jnp.log(sigma) - HALF_LOG_2PI
    act_tanh = jnp.tanh(act_pre)
    act = act_tanh * action_range
    logp = logp - jnp.log(action_range * (1.0 - act_tanh ** 2) + 1e-6)
    return act, jnp.sum(logp, axis=1, keepdims=True), entropy


if __name__ == "__main__":
    B, STATE_DIM, ACTION_DIM = 8, 8, 4
    ACTION_RANGE = 2.0

    key = jax.random.PRNGKey(0)
    k_state, k_eps, k_params = jax.random.split(key, 3)

    state = jax.random.normal(k_state, (B, STATE_DIM), jnp.float32)
    eps = jax.random.normal(k_eps, (B, ACTION_DIM), jnp.float32)  # Normal.rsample noise
    params = init_params(k_params, STATE_DIM, ACTION_DIM)

    act, logp, ent = actor_forward(state, params, eps, ACTION_RANGE)
    jax.block_until_ready((act, logp, ent))

    act_r, logp_r, ent_r = actor_forward_ref(state, params, eps, ACTION_RANGE)
    assert act.shape == (B, ACTION_DIM) and logp.shape == (B, 1) and ent.shape == (B, ACTION_DIM)
    assert jnp.allclose(act, act_r, atol=1e-5), "act mismatch"
    assert jnp.allclose(logp, logp_r, atol=1e-4), "log_prob mismatch"
    assert jnp.allclose(ent, ent_r, atol=1e-5), "entropy mismatch"

    # TODO(synk): `action is not None` branch (atanh of a given action) and the
    # torch.jit save/select_action host utilities are not part of this kernel.

    print("KERNEL_OK")
</pallas_src>

<mosaic_0001>
module attributes {stable_mosaic.version = 11 : i64} {
  func.func @actor_kernel(%arg0: i32, %arg1: memref<8x12xf32, #tpu.memory_space<vmem>>, %arg2: memref<48x16xf32, #tpu.memory_space<vmem>>, %arg3: memref<8x128xf32, #tpu.memory_space<vmem>>) attributes {dimension_semantics = [#tpu.dimension_semantics<parallel>], iteration_bounds = array<i64: 1>, scalar_prefetch = 0 : i64, scratch_operands = 0 : i64, tpu.core_type = #tpu.core_type<tc>, window_params = [{transform_indices = @transform_0, window_bounds = array<i64: 8, 12>}, {pipeline_mode = #tpu.pipeline_mode<synchronous>, transform_indices = @transform_1, window_bounds = array<i64: 48, 16>}, {transform_indices = @transform_2, window_bounds = array<i64: 8, 128>}]} {
    %c0 = arith.constant 0 : index
    %c0_0 = arith.constant 0 : index
    %0 = vector.load %arg1[%c0, %c0_0] : memref<8x12xf32, #tpu.memory_space<vmem>>, vector<8x12xf32>
    %1 = vector.extract_strided_slice %0 {offsets = [0, 0], sizes = [8, 8], strides = [1, 1]} : vector<8x12xf32> to vector<8x8xf32>
    %2 = vector.extract_strided_slice %0 {offsets = [0, 8], sizes = [8, 4], strides = [1, 1]} : vector<8x12xf32> to vector<8x4xf32>
    %c0_1 = arith.constant 0 : index
    %c0_2 = arith.constant 0 : index
    %3 = vector.load %arg2[%c0_1, %c0_2] : memref<48x16xf32, #tpu.memory_space<vmem>>, vector<8x16xf32>
    %c8 = arith.constant 8 : index
    %c0_3 = arith.constant 0 : index
    %4 = vector.load %arg2[%c8, %c0_3] : memref<48x16xf32, #tpu.memory_space<vmem>>, vector<16x16xf32>
    %c24 = arith.constant 24 : index
    %c0_4 = arith.constant 0 : index
    %5 = vector.load %arg2[%c24, %c0_4] : memref<48x16xf32, #tpu.memory_space<vmem>>, vector<16x16xf32>
    %c40 = arith.constant 40 : index
    %c0_5 = arith.constant 0 : index
    %6 = vector.load %arg2[%c40, %c0_5] : memref<48x16xf32, #tpu.memory_space<vmem>>, vector<1x16xf32>
    %c41 = arith.constant 41 : index
    %c0_6 = arith.constant 0 : index
    %7 = vector.load %arg2[%c41, %c0_6] : memref<48x16xf32, #tpu.memory_space<vmem>>, vector<1x16xf32>
    %c42 = arith.constant 42 : index
    %c0_7 = arith.constant 0 : index
    %8 = vector.load %arg2[%c42, %c0_7] : memref<48x16xf32, #tpu.memory_space<vmem>>, vector<1x16xf32>
    %cst = arith.constant dense<0.000000e+00> : vector<8x16xf32>
    %9 = tpu.matmul %1, %3, %cst {dimension_numbers = #tpu.dot_dimension_numbers<[1], [0], [0], [1], [0, 0, 1, 1], [], []>} : vector<8x8xf32>, vector<8x16xf32>, vector<8x16xf32> -> vector<8x16xf32>
    %10 = vector.broadcast %6 : vector<1x16xf32> to vector<8x16xf32>
    %11 = arith.addf %9, %10 : vector<8x16xf32>
    %cst_8 = arith.constant 0.000000e+00 : f32
    %12 = vector.broadcast %cst_8 : f32 to vector<8x16xf32>
    %13 = arith.maximumf %11, %12 : vector<8x16xf32>
    %cst_9 = arith.constant dense<0.000000e+00> : vector<8x16xf32>
    %14 = tpu.matmul %13, %4, %cst_9 {dimension_numbers = #tpu.dot_dimension_numbers<[1], [0], [0], [1], [0, 0, 1, 1], [], []>} : vector<8x16xf32>, vector<16x16xf32>, vector<8x16xf32> -> vector<8x16xf32>
    %15 = vector.broadcast %7 : vector<1x16xf32> to vector<8x16xf32>
    %16 = arith.addf %14, %15 : vector<8x16xf32>
    %cst_10 = arith.constant 0.000000e+00 : f32
    %17 = vector.broadcast %cst_10 : f32 to vector<8x16xf32>
    %18 = arith.maximumf %16, %17 : vector<8x16xf32>
    %cst_11 = arith.constant dense<0.000000e+00> : vector<8x16xf32>
    %19 = tpu.matmul %18, %5, %cst_11 {dimension_numbers = #tpu.dot_dimension_numbers<[1], [0], [0], [1], [0, 0, 1, 1], [], []>} : vector<8x16xf32>, vector<16x16xf32>, vector<8x16xf32> -> vector<8x16xf32>
    %20 = vector.broadcast %8 : vector<1x16xf32> to vector<8x16xf32>
    %21 = arith.addf %19, %20 : vector<8x16xf32>
    %22 = vector.extract_strided_slice %21 {offsets = [0, 0], sizes = [8, 4], strides = [1, 1]} : vector<8x16xf32> to vector<8x4xf32>
    %23 = vector.extract_strided_slice %21 {offsets = [0, 4], sizes = [8, 4], strides = [1, 1]} : vector<8x16xf32> to vector<8x4xf32>
    %cst_12 = arith.constant 0.000000e+00 : f32
    %24 = vector.broadcast %cst_12 : f32 to vector<8x4xf32>
    %25 = arith.maximumf %23, %24 : vector<8x4xf32>
    %26 = math.absf %23 : vector<8x4xf32>
    %cst_13 = arith.constant 0.000000e+00 : f32
    %27 = vector.broadcast %cst_13 : f32 to vector<8x4xf32>
    %28 = arith.subf %27, %26 : vector<8x4xf32>
    %29 = math.exp %28 : vector<8x4xf32>
    %30 = math.log1p %29 : vector<8x4xf32>
    %31 = arith.addf %25, %30 : vector<8x4xf32>
    %32 = math.log %31 : vector<8x4xf32>
    %33 = arith.mulf %31, %2 : vector<8x4xf32>
    %34 = arith.addf %22, %33 : vector<8x4xf32>
    %cst_14 = arith.constant 1.41893852 : f32
    %35 = vector.broadcast %cst_14 : f32 to vector<8x4xf32>
    %36 = arith.addf %35, %32 : vector<8x4xf32>
    %cst_15 = arith.constant -5.000000e-01 : f32
    %37 = vector.broadcast %cst_15 : f32 to vector<8x4xf32>
    %38 = arith.mulf %37, %2 : vector<8x4xf32>
    %39 = arith.mulf %38, %2 : vector<8x4xf32>
    %40 = arith.subf %39, %32 : vector<8x4xf32>
    %cst_16 = arith.constant 0.918938517 : f32
    %41 = vector.broadcast %cst_16 : f32 to vector<8x4xf32>
    %42 = arith.subf %40, %41 : vector<8x4xf32>
    %43 = math.tanh %34 : vector<8x4xf32>
    %cst_17 = arith.constant 2.000000e+00 : f32
    %44 = vector.broadcast %cst_17 : f32 to vector<8x4xf32>
    %45 = arith.mulf %43, %44 : vector<8x4xf32>
    %46 = arith.mulf %43, %43 : vector<8x4xf32>
    %cst_18 = arith.constant 1.000000e+00 : f32
    %47 = vector.broadcast %cst_18 : f32 to vector<8x4xf32>
    %48 = arith.subf %47, %46 : vector<8x4xf32>
    %cst_19 = arith.constant 2.000000e+00 : f32
    %49 = vector.broadcast %cst_19 : f32 to vector<8x4xf32>
    %50 = arith.mulf %49, %48 : vector<8x4xf32>
    %cst_20 = arith.constant 9.99999997E-7 : f32
    %51 = vector.broadcast %cst_20 : f32 to vector<8x4xf32>
    %52 = arith.addf %50, %51 : vector<8x4xf32>
    %53 = math.log %52 : vector<8x4xf32>
    %54 = arith.subf %42, %53 : vector<8x4xf32>
    %cst_21 = arith.constant dense<0.000000e+00> : vector<8xf32>
    %55 = vector.multi_reduction <add>, %54, %cst_21 [1] : vector<8x4xf32> to vector<8xf32>
    %56 = vector.shape_cast %55 : vector<8xf32> to vector<8x1xf32>
    %c0_22 = arith.constant 0 : index
    %c0_23 = arith.constant 0 : index
    %57 = vector.load %arg3[%c0_22, %c0_23] : memref<8x128xf32, #tpu.memory_space<vmem>>, vector<8x4xf32>
    tpu.vector_store %arg3[%c0_22, %c0_23], %45 {strides = array<i32>} : memref<8x128xf32, #tpu.memory_space<vmem>>, vector<8x4xf32>,
    %c0_24 = arith.constant 0 : index
    %c4 = arith.constant 4 : index
    %58 = vector.load %arg3[%c0_24, %c4] : memref<8x128xf32, #tpu.memory_space<vmem>>, vector<8x4xf32>
    tpu.vector_store %arg3[%c0_24, %c4], %36 {strides = array<i32>} : memref<8x128xf32, #tpu.memory_space<vmem>>, vector<8x4xf32>,
    %c0_25 = arith.constant 0 : index
    %c8_26 = arith.constant 8 : index
    %59 = vector.load %arg3[%c0_25, %c8_26] : memref<8x128xf32, #tpu.memory_space<vmem>>, vector<8x1xf32>
    tpu.vector_store %arg3[%c0_25, %c8_26], %56 {strides = array<i32>} : memref<8x128xf32, #tpu.memory_space<vmem>>, vector<8x1xf32>,
    return
  }
  func.func @transform_0(%arg0: i32) -> (i32, i32) {
    %c0_i32 = arith.constant 0 : i32
    %c0_i32_0 = arith.constant 0 : i32
    return %arg0, %c0_i32 : i32, i32
  }
  func.func @transform_1(%arg0: i32) -> (i32, i32) {
    %c0_i32 = arith.constant 0 : i32
    %c0_i32_0 = arith.constant 0 : i32
    %c0_i32_1 = arith.constant 0 : i32
    return %c0_i32, %c0_i32_0 : i32, i32
  }
  func.func @transform_2(%arg0: i32) -> (i32, i32) {
    %c0_i32 = arith.constant 0 : i32
    %c0_i32_0 = arith.constant 0 : i32
    return %arg0, %c0_i32 : i32, i32
  }
}

</mosaic_0001>

<llo_original>
// kernel: tpu_custom_call.1
$region0: #{tpu_custom_call.1}
  #allocation0 [shape = 'u32[]', space=smem, size = 0x4, offset = 0x4, fixed_abs, tag = 'smem constant byte address 0x4 - core index']
  #allocation1 [shape = 'u32[144,128]{1,0:T(1,128)}', space=vmem, size = 0x12000, scoped, tag = 'internal scratch']
  %s0 = inlined_call_operand.vmem [shape: f32[8,12], index: 0, kind: input, shape index: {}]
  %s1 = inlined_call_operand.vmem [shape: f32[48,16], index: 1, kind: input, shape index: {}]
  %s2 = inlined_call_operand.hbm [shape: f32[8,128], index: 2, kind: output, shape index: {}]
  %s3 = sld [smem:[#allocation0]]
  $region18: #{tpu_custom_call.1} parent=0
    _
  %s5 = ssub.s32 1, %s3
  %s6 = scalar_select 0, %s5, %s3
  $region1: #{tpu_custom_call.1} parent=0
    #allocation2 [shape = 'u8[4096]{0}', space=vmem, size = 0x1000, scoped, tag = 'output window, operand 0, single buffered']
    #allocation3 [shape = 's32[1]{0}', space=sflag, size = 0x4, scoped, tag = 'scoped memory for tpu_custom_call.1']
    %7 = vsyncpa [#allocation3], 0
    // Predicated region
    $region2: #{tpu_custom_call.1} parent=1 // pred_check
      _
    $region3: #{tpu_custom_call.1} parent=1 // pred_check_branch
      %9 = sbr.rel (0) target = $region5
    $region4: #{tpu_custom_call.1} parent=1 // pred_region
      _
    $region5: #{tpu_custom_call.1} parent=1 // pred_fallthru
      _
    // Predicated region
    $region6: #{tpu_custom_call.1} parent=1 // pred_check
      _
    $region7: #{tpu_custom_call.1} parent=1 // pred_check_branch
      %11 = sbr.rel (0) target = $region9
    $region8: #{tpu_custom_call.1} parent=1 // pred_region
      _
    $region9: #{tpu_custom_call.1} parent=1 // pred_fallthru
      _
    %v12 = vld [vmem:[%s0] sm:$0xff]
    %v13 = vld [vmem:[%s1] sm:$0xff]
    %v14 = vld [vmem:[%s1 + $0x8] sm:$0xff]
    %v15 = vld [vmem:[%s1 + $0x10] sm:$0xff]
    %v16 = vld [vmem:[%s1 + $0x18] sm:$0xff]
    %v17 = vld [vmem:[%s1 + $0x20] sm:$0xff]
    %v18 = vld [vmem:[%s1 + $0x28] sm:$0x1]
    %v19 = vld [vmem:[%s1 + $0x29] sm:$0x1]
    %v20 = vld [vmem:[%s1 + $0x2a] sm:$0x1]
    %v21 = vlaneseq
    %v22 = vshrl.u32 %v21, 7
    %v23 = vsub.s32 0, %v22
    %v24 = vrot.slane %v18, %v23
    %vm25 = vcmask 64512
    %v27 = vsel %vm25, %v12, 0
    %29 = vmatprep.subr.mxu0 0.0
    %30 = vmatpush1.msra.mxu0 0.0
    %31 = vmatprep.subr.mxu0 0.0
    %32 = vmatpush1.msra.mxu0 0.0
    %33 = vmatprep.subr.mxu0 0.0
    %34 = vmatpush1.msra.mxu0 0.0
    %35 = vmatprep.subr.mxu0 0.0
    %36 = vmatpush1.msra.mxu0 0.0
    %37 = vmatprep.subr.mxu0 0.0
    %38 = vmatpush1.msra.mxu0 0.0
    %39 = vmatprep.subr.mxu0 0.0
    %40 = vmatpush1.msra.mxu0 0.0
    %41 = vmatprep.subr.mxu0 0.0
    %42 = vmatpush1.msra.mxu0 0.0
    %43 = vmatprep.subr.mxu0 0.0
    %44 = vmatpush1.msra.mxu0 0.0
    %45 = vmatprep.subr.mxu0 0.0
    %46 = vmatpush1.msra.mxu0 0.0
    %47 = vmatprep.subr.mxu0 0.0
    %48 = vmatpush1.msra.mxu0 0.0
    %49 = vmatprep.subr.mxu0 0.0
    %50 = vmatpush1.msra.mxu0 0.0
    %51 = vmatprep.subr.mxu0 0.0
    %52 = vmatpush1.msra.mxu0 0.0
    %53 = vmatprep.subr.mxu0 0.0
    %54 = vmatpush1.msra.mxu0 0.0
    %55 = vmatprep.subr.mxu0 0.0
    %56 = vmatpush1.msra.mxu0 0.0
    %57 = vmatprep.subr.mxu0 0.0
    %58 = vmatpush1.msra.mxu0 0.0
    %59 = vmatprep.subr.mxu0 0.0
    %60 = vmatpush1.msra.mxu0 %v13
    %61 = vmatprep.subr.mxu0 0.0
    %62 = vmatpush2.msra.mxu0 0.0
    %63 = vmatprep.subr.mxu0 0.0
    %64 = vmatpush2.msra.mxu0 0.0
    %65 = vmatprep.subr.mxu0 0.0
    %66 = vmatpush2.msra.mxu0 0.0
    %67 = vmatprep.subr.mxu0 0.0
    %68 = vmatpush2.msra.mxu0 0.0
    %69 = vmatprep.subr.mxu0 0.0
    %70 = vmatpush2.msra.mxu0 0.0
    %71 = vmatprep.subr.mxu0 0.0
    %72 = vmatpush2.msra.mxu0 0.0
    %73 = vmatprep.subr.mxu0 0.0
    %74 = vmatpush2.msra.mxu0 0.0
    %75 = vmatprep.subr.mxu0 0.0
    %76 = vmatpush2.msra.mxu0 0.0
    %77 = vmatprep.subr.mxu0 0.0
    %78 = vmatpush2.msra.mxu0 0.0
    %79 = vmatprep.subr.mxu0 0.0
    %80 = vmatpush2.msra.mxu0 0.0
    %81 = vmatprep.subr.mxu0 0.0
    %82 = vmatpush2.msra.mxu0 0.0
    %83 = vmatprep.subr.mxu0 0.0
    %84 = vmatpush2.msra.mxu0 0.0
    %85 = vmatprep.subr.mxu0 0.0
    %86 = vmatpush2.msra.mxu0 0.0
    %87 = vmatprep.subr.mxu0 0.0
    %88 = vmatpush2.msra.mxu0 0.0
    %89 = vmatprep.subr.mxu0 0.0
    %90 = vmatpush2.msra.mxu0 0.0
    %91 = vmatprep.subr.mxu0 0.0
    %92 = vmatpush2.msra.mxu0 0.0
    %93 = vmatprep.mubr.f32.mxu0 0.0
    %94 = vmatmul.mubr.f32.gmra.mxu0 %v27
    %v95 = vpop.f32.mrf.mxu0
    %v96 = vadd.f32 %v24, %v95
    %v97 = vpop.f32.mrf.mxu0
    %98 = vdwg.mxu0
    %v99 = vmax.f32 %v96, 0.0
    %v100 = vlaneseq
    %v101 = vshrl.u32 %v100, 7
    %v102 = vsub.s32 0, %v101
    %v103 = vrot.slane %v19, %v102
    %vm104 = vcmask 130048
    %v106 = vsel %vm104, %v99, 0
    %108 = vmatprep.subr.mxu0 0.0
    %109 = vmatpush1.msra.mxu0 0.0
    %110 = vmatprep.subr.mxu0 0.0
    %111 = vmatpush1.msra.mxu0 0.0
    %112 = vmatprep.subr.mxu0 0.0
    %113 = vmatpush1.msra.mxu0 0.0
    %114 = vmatprep.subr.mxu0 0.0
    %115 = vmatpush1.msra.mxu0 0.0
    %116 = vmatprep.subr.mxu0 0.0
    %117 = vmatpush1.msra.mxu0 0.0
    %118 = vmatprep.subr.mxu0 0.0
    %119 = vmatpush1.msra.mxu0 0.0
    %120 = vmatprep.subr.mxu0 0.0
    %121 = vmatpush1.msra.mxu0 0.0
    %122 = vmatprep.subr.mxu0 0.0
    %123 = vmatpush1.msra.mxu0 0.0
    %124 = vmatprep.subr.mxu0 0.0
    %125 = vmatpush1.msra.mxu0 0.0
    %126 = vmatprep.subr.mxu0 0.0
    %127 = vmatpush1.msra.mxu0 0.0
    %128 = vmatprep.subr.mxu0 0.0
    %129 = vmatpush1.msra.mxu0 0.0
    %130 = vmatprep.subr.mxu0 0.0
    %131 = vmatpush1.msra.mxu0 0.0
    %132 = vmatprep.subr.mxu0 0.0
    %133 = vmatpush1.msra.mxu0 0.0
    %134 = vmatprep.subr.mxu0 0.0
    %135 = vmatpush1.msra.mxu0 0.0
    %136 = vmatprep.subr.mxu0 0.0
    %137 = vmatpush1.msra.mxu0 %v15
    %138 = vmatprep.subr.mxu0 0.0
    %139 = vmatpush1.msra.mxu0 %v14
    %140 = vmatprep.subr.mxu0 0.0
    %141 = vmatpush2.msra.mxu0 0.0
    %142 = vmatprep.subr.mxu0 0.0
    %143 = vmatpush2.msra.mxu0 0.0
    %144 = vmatprep.subr.mxu0 0.0
    %145 = vmatpush2.msra.mxu0 0.0
    %146 = vmatprep.subr.mxu0 0.0
    %147 = vmatpush2.msra.mxu0 0.0
    %148 = vmatprep.subr.mxu0 0.0
    %149 = vmatpush2.msra.mxu0 0.0
    %150 = vmatprep.subr.mxu0 0.0
    %151 = vmatpush2.msra.mxu0 0.0
    %152 = vmatprep.subr.mxu0 0.0
    %153 = vmatpush2.msra.mxu0 0.0
    %154 = vmatprep.subr.mxu0 0.0
    %155 = vmatpush2.msra.mxu0 0.0
    %156 = vmatprep.subr.mxu0 0.0
    %157 = vmatpush2.msra.mxu0 0.0
    %158 = vmatprep.subr.mxu0 0.0
    %159 = vmatpush2.msra.mxu0 0.0
    %160 = vmatprep.subr.mxu0 0.0
    %161 = vmatpush2.msra.mxu0 0.0
    %162 = vmatprep.subr.mxu0 0.0
    %163 = vmatpush2.msra.mxu0 0.0
    %164 = vmatprep.subr.mxu0 0.0
    %165 = vmatpush2.msra.mxu0 0.0
    %166 = vmatprep.subr.mxu0 0.0
    %167 = vmatpush2.msra.mxu0 0.0
    %168 = vmatprep.subr.mxu0 0.0
    %169 = vmatpush2.msra.mxu0 0.0
    %170 = vmatprep.subr.mxu0 0.0
    %171 = vmatpush2.msra.mxu0 0.0
    %172 = vmatprep.mubr.f32.mxu0 0.0
    %173 = vmatmul.mubr.f32.gmra.mxu0 %v106
    %v174 = vpop.f32.mrf.mxu0
    %v175 = vadd.f32 %v103, %v174
    %v176 = vpop.f32.mrf.mxu0
    %177 = vdwg.mxu0
    %v178 = vmax.f32 %v175, 0.0
    %v179 = vlaneseq
    %v180 = vshrl.u32 %v179, 7
    %v181 = vsub.s32 0, %v180
    %v182 = vrot.slane %v20, %v181
    %v184 = vsel %vm104, %v178, 0
    %186 = vmatprep.subr.mxu0 0.0
    %187 = vmatpush1.msra.mxu0 0.0
    %188 = vmatprep.subr.mxu0 0.0
    %189 = vmatpush1.msra.mxu0 0.0
    %190 = vmatprep.subr.mxu0 0.0
    %191 = vmatpush1.msra.mxu0 0.0
    %192 = vmatprep.subr.mxu0 0.0
    %193 = vmatpush1.msra.mxu0 0.0
    %194 = vmatprep.subr.mxu0 0.0
    %195 = vmatpush1.msra.mxu0 0.0
    %196 = vmatprep.subr.mxu0 0.0
    %197 = vmatpush1.msra.mxu0 0.0
    %198 = vmatprep.subr.mxu0 0.0
    %199 = vmatpush1.msra.mxu0 0.0
    %200 = vmatprep.subr.mxu0 0.0
    %201 = vmatpush1.msra.mxu0 0.0
    %202 = vmatprep.subr.mxu0 0.0
    %203 = vmatpush1.msra.mxu0 0.0
    %204 = vmatprep.subr.mxu0 0.0
    %205 = vmatpush1.msra.mxu0 0.0
    %206 = vmatprep.subr.mxu0 0.0
    %207 = vmatpush1.msra.mxu0 0.0
    %208 = vmatprep.subr.mxu0 0.0
    %209 = vmatpush1.msra.mxu0 0.0
    %210 = vmatprep.subr.mxu0 0.0
    %211 = vmatpush1.msra.mxu0 0.0
    %212 = vmatprep.subr.mxu0 0.0
    %213 = vmatpush1.msra.mxu0 0.0
    %214 = vmatprep.subr.mxu0 0.0
    %215 = vmatpush1.msra.mxu0 %v17
    %216 = vmatprep.subr.mxu0 0.0
    %217 = vmatpush1.msra.mxu0 %v16
    %218 = vmatprep.subr.mxu0 0.0
    %219 = vmatpush2.msra.mxu0 0.0
    %220 = vmatprep.subr.mxu0 0.0
    %221 = vmatpush2.msra.mxu0 0.0
    %222 = vmatprep.subr.mxu0 0.0
    %223 = vmatpush2.msra.mxu0 0.0
    %224 = vmatprep.subr.mxu0 0.0
    %225 = vmatpush2.msra.mxu0 0.0
    %226 = vmatprep.subr.mxu0 0.0
    %227 = vmatpush2.msra.mxu0 0.0
    %228 = vmatprep.subr.mxu0 0.0
    %229 = vmatpush2.msra.mxu0 0.0
    %230 = vmatprep.subr.mxu0 0.0
    %231 = vmatpush2.msra.mxu0 0.0
    %232 = vmatprep.subr.mxu0 0.0
    %233 = vmatpush2.msra.mxu0 0.0
    %234 = vmatprep.subr.mxu0 0.0
    %235 = vmatpush2.msra.mxu0 0.0
    %236 = vmatprep.subr.mxu0 0.0
    %237 = vmatpush2.msra.mxu0 0.0
    %238 = vmatprep.subr.mxu0 0.0
    %239 = vmatpush2.msra.mxu0 0.0
    %240 = vmatprep.subr.mxu0 0.0
    %241 = vmatpush2.msra.mxu0 0.0
    %242 = vmatprep.subr.mxu0 0.0
    %243 = vmatpush2.msra.mxu0 0.0
    %244 = vmatprep.subr.mxu0 0.0
    %245 = vmatpush2.msra.mxu0 0.0
    %246 = vmatprep.subr.mxu0 0.0
    %247 = vmatpush2.msra.mxu0 0.0
    %248 = vmatprep.subr.mxu0 0.0
    %249 = vmatpush2.msra.mxu0 0.0
    %250 = vmatprep.mubr.f32.mxu0 0.0
    %251 = vmatmul.mubr.f32.gmra.mxu0 %v184
    %v252 = vpop.f32.mrf.mxu0
    %v253 = vadd.f32 %v182, %v252
    %v254 = vpop.f32.mrf.mxu0
    %255 = vdwg.mxu0
    %v256 = vmax.f32 %v253, 0.0
    %v257 = vand.u32 2147483647, %v253
    %v258 = vsub.f32 0.0, %v257
    %v259 = vmul.f32 %v258, 1.442695
    %v260 = vpow.pop %v259
    %v261 = vadd.f32 %v260, 1.0
    %v262 = vlog2.pop %v261
    %v263 = vmul.f32 %v262, 0.6931472
    %v264 = vmul.f32 -0.5, %v260
    %v265 = vadd.f32 %v264, 1.0
    %v266 = vmul.f32 %v265, %v260
    %v267 = vand.u32 2147483647, %v260
    %vm268 = vcmp.lt.f32.partialorder %v267, 0.0004427343
    %v269 = vsel %vm268, %v266, %v263
    %v270 = vadd.f32 %v256, %v269
    %v271 = vlog2.pop %v270
    %v272 = vmul.f32 %v271, 0.6931472
    %273 = vrot.lane.b32.xlu0 %v12, 124
    %v274 = vpop.permute.xlu0 %273
    %v276 = vmul.f32 %v270, %v274
    %278 = vrot.lane.b32.xlu0 %v276, 124
    %v279 = vpop.permute.xlu0 %278
    %v281 = vadd.f32 %v253, %v279
    %v282 = vadd.f32 %v272, 1.4189385
    %v283 = vmul.f32 %v12, -0.5
    %v284 = vmul.f32 %v283, %v12
    %286 = vrot.lane.b32.xlu0 %v272, 4
    %v287 = vpop.permute.xlu0 %286
    %v289 = vsub.f32 %v284, %v287
    %v290 = vsub.f32 %v289, 0.9189385
    %v291 = vtanh.pop %v281
    %v292 = vmul.f32 %v291, 2.0
    %v293 = vmul.f32 %v291, %v291
    %v294 = vsub.f32 1.0, %v293
    %v295 = vmul.f32 %v294, 2.0
    %v296 = vadd.f32 %v295, 1e-06
    %v297 = vlog2.pop %v296
    %v298 = vmul.f32 %v297, 0.6931472
    %300 = vrot.lane.b32.xlu0 %v298, 8
    %v301 = vpop.permute.xlu0 %300
    %v303 = vsub.f32 %v290, %v301
    %305 = vrot.lane.b32.xlu0 %v303, 120
    %v306 = vpop.permute.xlu0 %305
    %vm308 = vcmask 31744
    %v309 = vsel %vm308, %v306, 0.0
    %310 = vadd.xlane.f32.xlu0 %v309
    %v311 = vpop.xlane.xlu0 %310
    %312 = vst.msk [vmem:[#allocation2] sm:$0xff] %vm308, %v292
    %vm313 = vcmask 64544
    %314 = vst.msk [vmem:[#allocation2] sm:$0xff] %vm313, %v282
    %vm315 = vcmask 72768
    %316 = vst.msk [vmem:[#allocation2] sm:$0xff] %vm315, %v311
    // Predicated region
    $region10: #{tpu_custom_call.1} parent=1 // pred_check
      _
    $region11: #{tpu_custom_call.1} parent=1 // pred_check_branch
      %318 = sbr.rel (0) target = $region13
    $region12: #{tpu_custom_call.1} parent=1 // pred_region
      %s320 = ssub.s32 128, 128
      %321 = vsyncadd [#allocation3], %s320
      %s323 = sshll.u32 [#allocation2], 4
      %s324 = int_to_ptr.vmem [resolvable:$true] %s323
      %326 = dma.vmem_to_hbm [thread:$0]  %s324, 128, %s2, [#allocation3]
    $region13: #{tpu_custom_call.1} parent=1 // pred_fallthru
      _
    // Predicated region
    $region14: #{tpu_custom_call.1} parent=1 // pred_check
      _
    $region15: #{tpu_custom_call.1} parent=1 // pred_check_branch
      %328 = sbr.rel (0) target = $region17
    $region16: #{tpu_custom_call.1} parent=1 // pred_region
      %329 = dma.done [#allocation3], 128
    $region17: #{tpu_custom_call.1} parent=1 // pred_fallthru
      _
    %330 = vsyncpa [#allocation3], 1

</llo_original>
